<compile_context>
chip_gen: v6e
topology: v6e:2x2x1
jax: 0.10.0
libtpu: 0.0.40
codegen_flags: <defaults>
</compile_context>

<pallas_src>
import functools

import jax
import jax.numpy as jnp
from jax.experimental import pallas as pl
from jax.experimental.pallas import tpu as pltpu


# --------------------------------------------------------------------------- #
# Kernel
# --------------------------------------------------------------------------- #
def _double_conv_kernel(x_ref, w1_ref, b1_ref, w2_ref, b2_ref, o_ref,
                        xpad_ref, ypad_ref, *, n_batch, height, neg_slope):
    """Fused (conv3x3 + folded-BN + LeakyReLU) x 2, all batches in one step.

    x_ref   : (N, H, W*Cin)            lane-packed input rows
    w1_ref  : (3*W*Cin,  W*Cmid) bf16  tap-folded banded conv1 weight (BN scale folded)
    b1_ref  : (1, W*Cmid)        f32   folded BN1 bias tiled over W
    w2_ref  : (3*W*Cmid, W*Cout) bf16  tap-folded banded conv2 weight
    b2_ref  : (1, W*Cout)        f32
    o_ref   : (N, H, W*Cout)           lane-dense output (128 lanes here)
    xpad_ref: (N*(H+2), W*Cin)   f32   stacked input, zero halo/separator rows
    ypad_ref: (N*(H+2), W*Cmid)  f32   stacked intermediate, same layout
    """
    N, H = n_batch, height
    Hp = H + 2
    M = N * Hp                 # stacked padded rows
    Mo = M - 2                 # conv output rows computed (incl. N-1 junk pairs)
    WCmid = ypad_ref.shape[1]

    # ---- stage the stacked, H-halo-padded input: one full-tile zero store,
    #      then N aligned H-row copies (W padding is folded into the weights).
    xpad_ref[...] = jnp.zeros_like(xpad_ref)
    for b in range(N):
        xpad_ref[b * Hp + 1:b * Hp + 1 + H, :] = x_ref[b].astype(jnp.float32)

    # ---- conv1 + BN1 + LeakyReLU: ONE 192-deep MXU matmul (taps folded) ------
    cols1 = jnp.concatenate(
        [xpad_ref[0:Mo, :], xpad_ref[1:Mo + 1, :], xpad_ref[2:Mo + 2, :]],
        axis=1)                                           # (Mo, 3*W*Cin)
    y1 = jnp.dot(cols1.astype(jnp.bfloat16), w1_ref[...],
                 preferred_element_type=jnp.float32)
    y1 = y1 + b1_ref[...]                                 # folded BN bias
    y1 = jnp.where(y1 > 0, y1, neg_slope * y1)            # LeakyReLU(0.01)
    # Dropout2d(p=0) == identity.

    # ---- intermediate stays entirely in VMEM, re-padded in the same layout ---
    ypad_ref[...] = jnp.zeros_like(ypad_ref)
    ypad_ref[1:Mo + 1, :] = y1
    for b in range(N - 1):     # re-zero the 2 junk rows at each batch boundary
        ypad_ref[b * Hp + H + 1:b * Hp + H + 3, :] = jnp.zeros((2, WCmid),
                                                               jnp.float32)

    # ---- conv2 + BN2 + LeakyReLU: ONE 384-deep MXU matmul --------------------
    cols2 = jnp.concatenate(
        [ypad_ref[0:Mo, :], ypad_ref[1:Mo + 1, :], ypad_ref[2:Mo + 2, :]],
        axis=1)                                           # (Mo, 3*W*Cmid)
    y2 = jnp.dot(cols2.astype(jnp.bfloat16), w2_ref[...],
                 preferred_element_type=jnp.float32)
    y2 = y2 + b2_ref[...]
    y2 = jnp.where(y2 > 0, y2, neg_slope * y2)

    # ---- scatter valid rows per batch (junk boundary rows discarded) ---------
    for b in range(N):
        o_ref[b] = y2[b * Hp:b * Hp + H, :].astype(o_ref.dtype)


# --------------------------------------------------------------------------- #
# One-time parameter preparation (hoisted out of the forward path)
# --------------------------------------------------------------------------- #
def _fold_bn(gamma, beta, mean, var, eps=1e-5):
    scale = gamma * jax.lax.rsqrt(var + eps)
    bias = beta - mean * scale
    return scale, bias


def _build_banded_weight(w_oihw, scale, W):
    """Torch (Cout, Cin, K, K) conv weight + per-channel BN scale ->
    tap-folded banded weight (K*W*Cin, W*Cout):
      row = kh*W*Cin + wi*Cin + ci, col = wo*Cout + co, nonzero iff
      wi == wo + kw - 1  (the kw taps and W-direction zero padding are the band).
    """
    Cout, Cin, K, Kw = w_oihw.shape
    w_hwio = jnp.transpose(w_oihw, (2, 3, 1, 0)) * scale[None, None, None, :]
    bands = []
    for kh in range(K):
        acc = jnp.zeros((W, Cin, W, Cout), w_hwio.dtype)
        for kw in range(Kw):
            diag = jnp.eye(W, W, k=1 - kw, dtype=w_hwio.dtype)   # wi -> wo
            acc = acc + jnp.einsum("ij,ck->icjk", diag, w_hwio[kh, kw])
        bands.append(acc.reshape(W * Cin, W * Cout))
    return jnp.concatenate(bands, axis=0)                 # (K*W*Cin, W*Cout)


def prepare_params(params, W):
    """Init-time prep: fold BN, build tap-folded banded bf16 weights + biases."""
    s1, b1 = _fold_bn(params["bn1_gamma"], params["bn1_beta"],
                      params["bn1_mean"], params["bn1_var"])
    s2, b2 = _fold_bn(params["bn2_gamma"], params["bn2_beta"],
                      params["bn2_mean"], params["bn2_var"])
    Cmid = params["w1"].shape[0]
    Cout = params["w2"].shape[0]
    return {
        "wf1": _build_banded_weight(params["w1"], s1, W).astype(jnp.bfloat16),
        "wf2": _build_banded_weight(params["w2"], s2, W).astype(jnp.bfloat16),
        "b1": jnp.tile(b1, W).reshape(1, W * Cmid).astype(jnp.float32),
        "b2": jnp.tile(b2, W).reshape(1, W * Cout).astype(jnp.float32),
    }


# --------------------------------------------------------------------------- #
# Forward wrapper
# --------------------------------------------------------------------------- #
def double_conv_strided(x_nchw, prep, *, neg_slope=0.01):
    """DoubleConv_strided forward: (N, Cin, H, W) -> (N, Cout, H, W)."""
    N, Cin, H, W = x_nchw.shape
    WCmid = prep["b1"].shape[1]
    WCout = prep["b2"].shape[1]
    Cout = WCout // W

    # NCHW -> lane-packed rows (N, H, W*C), channel fastest within the lanes.
    # TODO(synk): these transposes could be dropped if neighbouring layers
    # consume the (N, H, W*C) packed layout directly.
    x_packed = jnp.transpose(x_nchw, (0, 2, 3, 1)).reshape(N, H, W * Cin)

    kernel = functools.partial(_double_conv_kernel, n_batch=N, height=H,
                               neg_slope=neg_slope)
    out_packed = pl.pallas_call(
        kernel,
        out_shape=jax.ShapeDtypeStruct((N, H, WCout), x_nchw.dtype),
        grid=(1,),                                   # single step: batches stacked
        in_specs=[
            pl.BlockSpec((N, H, W * Cin), lambda i: (0, 0, 0)),
            pl.BlockSpec(prep["wf1"].shape, lambda i: (0, 0)),
            pl.BlockSpec((1, WCmid), lambda i: (0, 0)),
            pl.BlockSpec(prep["wf2"].shape, lambda i: (0, 0)),
            pl.BlockSpec((1, WCout), lambda i: (0, 0)),
        ],
        out_specs=pl.BlockSpec((N, H, WCout), lambda i: (0, 0, 0)),
        scratch_shapes=[
            pltpu.VMEM((N * (H + 2), W * Cin), jnp.float32),
            pltpu.VMEM((N * (H + 2), WCmid), jnp.float32),
        ],
        compiler_params=pltpu.CompilerParams(
            dimension_semantics=("arbitrary",)),
    )(x_packed, prep["wf1"], prep["b1"], prep["wf2"], prep["b2"])

    # (N, H, W*Cout) -> NCHW
    return jnp.transpose(out_packed.reshape(N, H, W, Cout), (0, 3, 1, 2))


# --------------------------------------------------------------------------- #
# Pure-JAX reference (f32 lax.conv) for correctness checking
# --------------------------------------------------------------------------- #
def _reference(x_nchw, params, *, neg_slope=0.01):
    def block(x_nhwc, w_oihw, gamma, beta, mean, var):
        w_hwio = jnp.transpose(w_oihw, (2, 3, 1, 0))
        y = jax.lax.conv_general_dilated(
            x_nhwc, w_hwio, window_strides=(1, 1),
            padding=[(1, 1), (1, 1)],
            dimension_numbers=("NHWC", "HWIO", "NHWC"))
        s, b = _fold_bn(gamma, beta, mean, var)
        y = y * s + b
        return jnp.where(y > 0, y, neg_slope * y)

    x = jnp.transpose(x_nchw, (0, 2, 3, 1))
    y = block(x, params["w1"], params["bn1_gamma"], params["bn1_beta"],
              params["bn1_mean"], params["bn1_var"])
    y = block(y, params["w2"], params["bn2_gamma"], params["bn2_beta"],
              params["bn2_mean"], params["bn2_var"])
    return jnp.transpose(y, (0, 3, 1, 2))


# --------------------------------------------------------------------------- #
if __name__ == "__main__":
    # DoubleConv_strided(in_channels=4, out_channels=8): mid=8, k=3, pad=1.
    N, Cin, H, W = 2, 4, 16, 16
    Cmid, Cout, K = 8, 8, 3

    key = jax.random.PRNGKey(0)
    kx, kw1, kw2 = jax.random.split(key, 3)

    x = jax.random.normal(kx, (N, Cin, H, W), dtype=jnp.float32)

    params = {
        # Conv weights kept in PyTorch (Cout, Cin, K, K) layout.
        "w1": jax.random.normal(kw1, (Cmid, Cin, K, K), jnp.float32) * 0.2,
        "w2": jax.random.normal(kw2, (Cout, Cmid, K, K), jnp.float32) * 0.2,
        # Deterministic, non-trivial BatchNorm parameters (inference mode).
        "bn1_gamma": jnp.linspace(0.5, 1.5, Cmid, dtype=jnp.float32),
        "bn1_beta": jnp.linspace(-0.2, 0.2, Cmid, dtype=jnp.float32),
        "bn1_mean": jnp.linspace(-0.1, 0.1, Cmid, dtype=jnp.float32),
        "bn1_var": jnp.linspace(0.8, 1.2, Cmid, dtype=jnp.float32),
        "bn2_gamma": jnp.linspace(0.9, 1.1, Cout, dtype=jnp.float32),
        "bn2_beta": jnp.linspace(0.1, -0.1, Cout, dtype=jnp.float32),
        "bn2_mean": jnp.linspace(0.05, -0.05, Cout, dtype=jnp.float32),
        "bn2_var": jnp.linspace(1.1, 0.9, Cout, dtype=jnp.float32),
    }

    # One-time preparation (init-time, not in the per-call forward path).
    prep = prepare_params(params, W)

    fwd = jax.jit(double_conv_strided)
    out = jax.block_until_ready(fwd(x, prep))
    assert out.shape == (N, Cout, H, W), out.shape

    ref = jax.block_until_ready(_reference(x, params))
    # bf16 MXU inputs (f32 accumulation) -> looser tolerance than the f32 ref;
    # structural bugs would produce O(1) errors and still be caught.
    assert jnp.allclose(out, ref, atol=1e-1, rtol=5e-2), \
        float(jnp.max(jnp.abs(out - ref)))

    print("KERNEL_OK")
</pallas_src>

<mosaic_0001>
module attributes {stable_mosaic.version = 11 : i64} {
  func.func @_double_conv_kernel(%arg0: i32, %arg1: memref<2x16x64xf32, #tpu.memory_space<vmem>>, %arg2: memref<192x128xbf16, #tpu.memory_space<vmem>>, %arg3: memref<1x128xf32, #tpu.memory_space<vmem>>, %arg4: memref<384x128xbf16, #tpu.memory_space<vmem>>, %arg5: memref<1x128xf32, #tpu.memory_space<vmem>>, %arg6: memref<2x16x128xf32, #tpu.memory_space<vmem>>, %arg7: memref<36x64xf32, #tpu.memory_space<vmem>>, %arg8: memref<36x128xf32, #tpu.memory_space<vmem>>) attributes {dimension_semantics = [#tpu.dimension_semantics<arbitrary>], iteration_bounds = array<i64: 1>, scalar_prefetch = 0 : i64, scratch_operands = 2 : i64, tpu.core_type = #tpu.core_type<tc>, window_params = [{pipeline_mode = #tpu.pipeline_mode<synchronous>, transform_indices = @transform_0, window_bounds = array<i64: 2, 16, 64>}, {pipeline_mode = #tpu.pipeline_mode<synchronous>, transform_indices = @transform_1, window_bounds = array<i64: 192, 128>}, {pipeline_mode = #tpu.pipeline_mode<synchronous>, transform_indices = @transform_2, window_bounds = array<i64: 1, 128>}, {pipeline_mode = #tpu.pipeline_mode<synchronous>, transform_indices = @transform_3, window_bounds = array<i64: 384, 128>}, {pipeline_mode = #tpu.pipeline_mode<synchronous>, transform_indices = @transform_4, window_bounds = array<i64: 1, 128>}, {pipeline_mode = #tpu.pipeline_mode<synchronous>, transform_indices = @transform_5, window_bounds = array<i64: 2, 16, 128>}]} {
    %cst = arith.constant 0.000000e+00 : f32
    %0 = vector.broadcast %cst : f32 to vector<36x64xf32>
    %c0 = arith.constant 0 : index
    %c0_0 = arith.constant 0 : index
    %1 = vector.load %arg7[%c0, %c0_0] : memref<36x64xf32, #tpu.memory_space<vmem>>, vector<36x64xf32>
    tpu.vector_store %arg7[%c0, %c0_0], %0 {strides = array<i32>} : memref<36x64xf32, #tpu.memory_space<vmem>>, vector<36x64xf32>,
    %c0_1 = arith.constant 0 : index
    %c0_2 = arith.constant 0 : index
    %c0_3 = arith.constant 0 : index
    %2 = vector.load %arg1[%c0_1, %c0_2, %c0_3] : memref<2x16x64xf32, #tpu.memory_space<vmem>>, vector<1x16x64xf32>
    %3 = vector.shape_cast %2 : vector<1x16x64xf32> to vector<16x64xf32>
    %c1 = arith.constant 1 : index
    %c0_4 = arith.constant 0 : index
    %4 = vector.load %arg7[%c1, %c0_4] : memref<36x64xf32, #tpu.memory_space<vmem>>, vector<16x64xf32>
    tpu.vector_store %arg7[%c1, %c0_4], %3 {strides = array<i32>} : memref<36x64xf32, #tpu.memory_space<vmem>>, vector<16x64xf32>,
    %c1_5 = arith.constant 1 : index
    %c0_6 = arith.constant 0 : index
    %c0_7 = arith.constant 0 : index
    %5 = vector.load %arg1[%c1_5, %c0_6, %c0_7] : memref<2x16x64xf32, #tpu.memory_space<vmem>>, vector<1x16x64xf32>
    %6 = vector.shape_cast %5 : vector<1x16x64xf32> to vector<16x64xf32>
    %c19 = arith.constant 19 : index
    %c0_8 = arith.constant 0 : index
    %7 = vector.load %arg7[%c19, %c0_8] : memref<36x64xf32, #tpu.memory_space<vmem>>, vector<16x64xf32>
    tpu.vector_store %arg7[%c19, %c0_8], %6 {strides = array<i32>} : memref<36x64xf32, #tpu.memory_space<vmem>>, vector<16x64xf32>,
    %c0_9 = arith.constant 0 : index
    %c0_10 = arith.constant 0 : index
    %8 = vector.load %arg7[%c0_9, %c0_10] : memref<36x64xf32, #tpu.memory_space<vmem>>, vector<34x64xf32>
    %c1_11 = arith.constant 1 : index
    %c0_12 = arith.constant 0 : index
    %9 = vector.load %arg7[%c1_11, %c0_12] : memref<36x64xf32, #tpu.memory_space<vmem>>, vector<34x64xf32>
    %c2 = arith.constant 2 : index
    %c0_13 = arith.constant 0 : index
    %10 = vector.load %arg7[%c2, %c0_13] : memref<36x64xf32, #tpu.memory_space<vmem>>, vector<34x64xf32>
    %11 = tpu.concatenate %8, %9, %10 in 1 : vector<34x64xf32>, vector<34x64xf32>, vector<34x64xf32> -> vector<34x192xf32>
    %12 = arith.truncf %11 : vector<34x192xf32> to vector<34x192xbf16>
    %c0_14 = arith.constant 0 : index
    %c0_15 = arith.constant 0 : index
    %13 = vector.load %arg2[%c0_14, %c0_15] : memref<192x128xbf16, #tpu.memory_space<vmem>>, vector<192x128xbf16>
    %cst_16 = arith.constant dense<0.000000e+00> : vector<34x128xf32>
    %14 = tpu.matmul %12, %13, %cst_16 {dimension_numbers = #tpu.dot_dimension_numbers<[1], [0], [0], [1], [0, 0, 1, 1], [], []>} : vector<34x192xbf16>, vector<192x128xbf16>, vector<34x128xf32> -> vector<34x128xf32>
    %c0_17 = arith.constant 0 : index
    %c0_18 = arith.constant 0 : index
    %15 = vector.load %arg3[%c0_17, %c0_18] : memref<1x128xf32, #tpu.memory_space<vmem>>, vector<1x128xf32>
    %16 = vector.broadcast %15 : vector<1x128xf32> to vector<34x128xf32>
    %17 = arith.addf %14, %16 : vector<34x128xf32>
    %cst_19 = arith.constant 0.000000e+00 : f32
    %18 = vector.broadcast %cst_19 : f32 to vector<34x128xf32>
    %19 = arith.cmpf ogt, %17, %18 : vector<34x128xf32>
    %cst_20 = arith.constant 0.00999999977 : f32
    %20 = vector.broadcast %cst_20 : f32 to vector<34x128xf32>
    %21 = arith.mulf %20, %17 : vector<34x128xf32>
    %22 = arith.select %19, %17, %21 : vector<34x128xi1>, vector<34x128xf32>
    %cst_21 = arith.constant 0.000000e+00 : f32
    %23 = vector.broadcast %cst_21 : f32 to vector<36x128xf32>
    %c0_22 = arith.constant 0 : index
    %c0_23 = arith.constant 0 : index
    %24 = vector.load %arg8[%c0_22, %c0_23] : memref<36x128xf32, #tpu.memory_space<vmem>>, vector<36x128xf32>
    tpu.vector_store %arg8[%c0_22, %c0_23], %23 {strides = array<i32>} : memref<36x128xf32, #tpu.memory_space<vmem>>, vector<36x128xf32>,
    %c1_24 = arith.constant 1 : index
    %c0_25 = arith.constant 0 : index
    %25 = vector.load %arg8[%c1_24, %c0_25] : memref<36x128xf32, #tpu.memory_space<vmem>>, vector<34x128xf32>
    tpu.vector_store %arg8[%c1_24, %c0_25], %22 {strides = array<i32>} : memref<36x128xf32, #tpu.memory_space<vmem>>, vector<34x128xf32>,
    %cst_26 = arith.constant 0.000000e+00 : f32
    %26 = vector.broadcast %cst_26 : f32 to vector<2x128xf32>
    %c17 = arith.constant 17 : index
    %c0_27 = arith.constant 0 : index
    %27 = vector.load %arg8[%c17, %c0_27] : memref<36x128xf32, #tpu.memory_space<vmem>>, vector<2x128xf32>
    tpu.vector_store %arg8[%c17, %c0_27], %26 {strides = array<i32>} : memref<36x128xf32, #tpu.memory_space<vmem>>, vector<2x128xf32>,
    %c0_28 = arith.constant 0 : index
    %c0_29 = arith.constant 0 : index
    %28 = vector.load %arg8[%c0_28, %c0_29] : memref<36x128xf32, #tpu.memory_space<vmem>>, vector<34x128xf32>
    %c1_30 = arith.constant 1 : index
    %c0_31 = arith.constant 0 : index
    %29 = vector.load %arg8[%c1_30, %c0_31] : memref<36x128xf32, #tpu.memory_space<vmem>>, vector<34x128xf32>
    %c2_32 = arith.constant 2 : index
    %c0_33 = arith.constant 0 : index
    %30 = vector.load %arg8[%c2_32, %c0_33] : memref<36x128xf32, #tpu.memory_space<vmem>>, vector<34x128xf32>
    %31 = tpu.concatenate %28, %29, %30 in 1 : vector<34x128xf32>, vector<34x128xf32>, vector<34x128xf32> -> vector<34x384xf32>
    %32 = arith.truncf %31 : vector<34x384xf32> to vector<34x384xbf16>
    %c0_34 = arith.constant 0 : index
    %c0_35 = arith.constant 0 : index
    %33 = vector.load %arg4[%c0_34, %c0_35] : memref<384x128xbf16, #tpu.memory_space<vmem>>, vector<384x128xbf16>
    %cst_36 = arith.constant dense<0.000000e+00> : vector<34x128xf32>
    %34 = tpu.matmul %32, %33, %cst_36 {dimension_numbers = #tpu.dot_dimension_numbers<[1], [0], [0], [1], [0, 0, 1, 1], [], []>} : vector<34x384xbf16>, vector<384x128xbf16>, vector<34x128xf32> -> vector<34x128xf32>
    %c0_37 = arith.constant 0 : index
    %c0_38 = arith.constant 0 : index
    %35 = vector.load %arg5[%c0_37, %c0_38] : memref<1x128xf32, #tpu.memory_space<vmem>>, vector<1x128xf32>
    %36 = vector.broadcast %35 : vector<1x128xf32> to vector<34x128xf32>
    %37 = arith.addf %34, %36 : vector<34x128xf32>
    %cst_39 = arith.constant 0.000000e+00 : f32
    %38 = vector.broadcast %cst_39 : f32 to vector<34x128xf32>
    %39 = arith.cmpf ogt, %37, %38 : vector<34x128xf32>
    %cst_40 = arith.constant 0.00999999977 : f32
    %40 = vector.broadcast %cst_40 : f32 to vector<34x128xf32>
    %41 = arith.mulf %40, %37 : vector<34x128xf32>
    %42 = arith.select %39, %37, %41 : vector<34x128xi1>, vector<34x128xf32>
    %43 = vector.extract_strided_slice %42 {offsets = [0, 0], sizes = [16, 128], strides = [1, 1]} : vector<34x128xf32> to vector<16x128xf32>
    %c0_41 = arith.constant 0 : index
    %c0_42 = arith.constant 0 : index
    %c0_43 = arith.constant 0 : index
    %44 = vector.load %arg6[%c0_41, %c0_42, %c0_43] : memref<2x16x128xf32, #tpu.memory_space<vmem>>, vector<1x16x128xf32>
    %45 = vector.shape_cast %44 : vector<1x16x128xf32> to vector<16x128xf32>
    %46 = vector.shape_cast %43 : vector<16x128xf32> to vector<1x16x128xf32>
    tpu.vector_store %arg6[%c0_41, %c0_42, %c0_43], %46 {strides = array<i32>} : memref<2x16x128xf32, #tpu.memory_space<vmem>>, vector<1x16x128xf32>,
    %47 = vector.extract_strided_slice %42 {offsets = [18, 0], sizes = [16, 128], strides = [1, 1]} : vector<34x128xf32> to vector<16x128xf32>
    %c1_44 = arith.constant 1 : index
    %c0_45 = arith.constant 0 : index
    %c0_46 = arith.constant 0 : index
    %48 = vector.load %arg6[%c1_44, %c0_45, %c0_46] : memref<2x16x128xf32, #tpu.memory_space<vmem>>, vector<1x16x128xf32>
    %49 = vector.shape_cast %48 : vector<1x16x128xf32> to vector<16x128xf32>
    %50 = vector.shape_cast %47 : vector<16x128xf32> to vector<1x16x128xf32>
    tpu.vector_store %arg6[%c1_44, %c0_45, %c0_46], %50 {strides = array<i32>} : memref<2x16x128xf32, #tpu.memory_space<vmem>>, vector<1x16x128xf32>,
    return
  }
  func.func @transform_0(%arg0: i32) -> (i32, i32, i32) {
    %c0_i32 = arith.constant 0 : i32
    %c0_i32_0 = arith.constant 0 : i32
    %c0_i32_1 = arith.constant 0 : i32
    %c0_i32_2 = arith.constant 0 : i32
    return %c0_i32, %c0_i32_0, %c0_i32_1 : i32, i32, i32
  }
  func.func @transform_1(%arg0: i32) -> (i32, i32) {
    %c0_i32 = arith.constant 0 : i32
    %c0_i32_0 = arith.constant 0 : i32
    %c0_i32_1 = arith.constant 0 : i32
    return %c0_i32, %c0_i32_0 : i32, i32
  }
  func.func @transform_2(%arg0: i32) -> (i32, i32) {
    %c0_i32 = arith.constant 0 : i32
    %c0_i32_0 = arith.constant 0 : i32
    %c0_i32_1 = arith.constant 0 : i32
    return %c0_i32, %c0_i32_0 : i32, i32
  }
  func.func @transform_3(%arg0: i32) -> (i32, i32) {
    %c0_i32 = arith.constant 0 : i32
    %c0_i32_0 = arith.constant 0 : i32
    %c0_i32_1 = arith.constant 0 : i32
    return %c0_i32, %c0_i32_0 : i32, i32
  }
  func.func @transform_4(%arg0: i32) -> (i32, i32) {
    %c0_i32 = arith.constant 0 : i32
    %c0_i32_0 = arith.constant 0 : i32
    %c0_i32_1 = arith.constant 0 : i32
    return %c0_i32, %c0_i32_0 : i32, i32
  }
  func.func @transform_5(%arg0: i32) -> (i32, i32, i32) {
    %c0_i32 = arith.constant 0 : i32
    %c0_i32_0 = arith.constant 0 : i32
    %c0_i32_1 = arith.constant 0 : i32
    %c0_i32_2 = arith.constant 0 : i32
    return %c0_i32, %c0_i32_0, %c0_i32_1 : i32, i32, i32
  }
}

</mosaic_0001>

<llo_original>
// kernel: double_conv_strided.1
$region0: #{double_conv_strided.1}
  #allocation0 [shape = 'u32[]', space=smem, size = 0x4, offset = 0x4, fixed_abs, tag = 'smem constant byte address 0x4 - core index']
  #allocation1 [shape = 'u32[144,128]{1,0:T(1,128)}', space=vmem, size = 0x12000, scoped, tag = 'internal scratch']
  #allocation2 [shape = 'f32[36,64]{1,0:T(8,128)}', space=vmem, size = 0x5000, scoped, tag = 'scratch operand']
  #allocation3 [shape = 'f32[36,128]{1,0:T(8,128)}', space=vmem, size = 0x5000, scoped, tag = 'scratch operand']
  %s0 = inlined_call_operand.vmem [shape: f32[2,16,64], index: 0, kind: input, shape index: {}]
  %s1 = inlined_call_operand.vmem [shape: bf16[192,128], index: 1, kind: input, shape index: {}]
  %s2 = inlined_call_operand.vmem [shape: f32[1,128], index: 2, kind: input, shape index: {}]
  %s3 = inlined_call_operand.vmem [shape: bf16[384,128], index: 3, kind: input, shape index: {}]
  %s4 = inlined_call_operand.vmem [shape: f32[1,128], index: 4, kind: input, shape index: {}]
  %s5 = inlined_call_operand.vmem [shape: f32[2,16,128], index: 5, kind: output, shape index: {}]
  %s6 = sld [smem:[#allocation0]]
  $region30: #{double_conv_strided.1} parent=0
    _
  %s8 = ssub.s32 1, %s6
  %s9 = scalar_select 0, %s8, %s6
  // Predicated region
  $region2: #{double_conv_strided.1} parent=0 // pred_check
    _
  $region3: #{double_conv_strided.1} parent=0 // pred_check_branch
    %11 = sbr.rel (0) target = $region5
  $region4: #{double_conv_strided.1} parent=0 // pred_region
    _
  $region5: #{double_conv_strided.1} parent=0 // pred_fallthru
    _
  // Predicated region
  $region6: #{double_conv_strided.1} parent=0 // pred_check
    _
  $region7: #{double_conv_strided.1} parent=0 // pred_check_branch
    %13 = sbr.rel (0) target = $region9
  $region8: #{double_conv_strided.1} parent=0 // pred_region
    _
  $region9: #{double_conv_strided.1} parent=0 // pred_fallthru
    _
  // Predicated region
  $region10: #{double_conv_strided.1} parent=0 // pred_check
    _
  $region11: #{double_conv_strided.1} parent=0 // pred_check_branch
    %15 = sbr.rel (0) target = $region13
  $region12: #{double_conv_strided.1} parent=0 // pred_region
    _
  $region13: #{double_conv_strided.1} parent=0 // pred_fallthru
    _
  // Predicated region
  $region14: #{double_conv_strided.1} parent=0 // pred_check
    _
  $region15: #{double_conv_strided.1} parent=0 // pred_check_branch
    %17 = sbr.rel (0) target = $region17
  $region16: #{double_conv_strided.1} parent=0 // pred_region
    _
  $region17: #{double_conv_strided.1} parent=0 // pred_fallthru
    _
  // Predicated region
  $region18: #{double_conv_strided.1} parent=0 // pred_check
    _
  $region19: #{double_conv_strided.1} parent=0 // pred_check_branch
    %19 = sbr.rel (0) target = $region21
  $region20: #{double_conv_strided.1} parent=0 // pred_region
    _
  $region21: #{double_conv_strided.1} parent=0 // pred_fallthru
    _
  %vm21 = vcmask 523264
  %22 = vst.msk [vmem:[#allocation2] sm:$0xff] %vm21, 0.0
  %23 = vst.msk [vmem:[#allocation2 + $0x8] sm:$0xff] %vm21, 0.0
  %24 = vst.msk [vmem:[#allocation2 + $0x10] sm:$0xff] %vm21, 0.0
  %25 = vst.msk [vmem:[#allocation2 + $0x18] sm:$0xff] %vm21, 0.0
  %vm26 = vcmask 519168
  %27 = vst.msk [vmem:[#allocation2 + $0x20] sm:$0xf] %vm26, 0.0
  %v28 = vld [vmem:[%s0] sm:$0xff]
  %v29 = vld [vmem:[%s0 + $0x8] sm:$0xff]
  %30 = vst.msk [vmem:[#allocation2 + $0x1] sm:$0xff] %vm21, %v28
  %31 = vst.msk [vmem:[#allocation2 + $0x9] sm:$0xff] %vm21, %v29
  %s32 = scalar_lea.vmem %s0, 16
  %v33 = vld [vmem:[%s32] sm:$0xff]
  %v34 = vld [vmem:[%s32 + $0x8] sm:$0xff]
  %35 = vst.msk [vmem:[#allocation2 + $0x13] sm:$0xff] %vm21, %v33
  %36 = vst.msk [vmem:[#allocation2 + $0x1b] sm:$0xff] %vm21, %v34
  %v37 = vld [vmem:[#allocation2] sm:$0xff]
  %v38 = vld [vmem:[#allocation2 + $0x8] sm:$0xff]
  %v39 = vld [vmem:[#allocation2 + $0x10] sm:$0xff]
  %v40 = vld [vmem:[#allocation2 + $0x18] sm:$0xff]
  %v41 = vld [vmem:[#allocation2 + $0x20] sm:$0x3]
  %v42 = vld [vmem:[#allocation2 + $0x1] sm:$0xff]
  %v43 = vld [vmem:[#allocation2 + $0x9] sm:$0xff]
  %v44 = vld [vmem:[#allocation2 + $0x11] sm:$0xff]
  %v45 = vld [vmem:[#allocation2 + $0x19] sm:$0xff]
  %v46 = vld [vmem:[#allocation2 + $0x21] sm:$0x3]
  %v47 = vld [vmem:[#allocation2 + $0x2] sm:$0xff]
  %v48 = vld [vmem:[#allocation2 + $0xa] sm:$0xff]
  %v49 = vld [vmem:[#allocation2 + $0x12] sm:$0xff]
  %v50 = vld [vmem:[#allocation2 + $0x1a] sm:$0xff]
  %v51 = vld [vmem:[#allocation2 + $0x22] sm:$0x3]
  %57 = vrot.lane.b32.xlu0 %v42, 64
  %v58 = vpop.permute.xlu0 %57
  %59 = vrot.lane.b32.xlu0 %v43, 64
  %v60 = vpop.permute.xlu0 %59
  %61 = vrot.lane.b32.xlu0 %v44, 64
  %v62 = vpop.permute.xlu0 %61
  %63 = vrot.lane.b32.xlu0 %v45, 64
  %v64 = vpop.permute.xlu0 %63
  %65 = vrot.lane.b32.xlu0 %v46, 64
  %v66 = vpop.permute.xlu0 %65
  %v72 = vsel %vm21, %v37, %v58
  %v73 = vsel %vm21, %v38, %v60
  %v74 = vsel %vm21, %v39, %v62
  %v75 = vsel %vm21, %v40, %v64
  %v76 = vsel %vm21, %v41, %v66
  %v77 = vpack.c.bf16 %v73, %v72
  %v78 = vpack.c.bf16 %v48, %v47
  %v79 = vpack.c.bf16 %v75, %v74
  %v80 = vpack.c.bf16 %v50, %v49
  %v81 = vpack.c.bf16 %v76, %v76
  %v82 = vpack.c.bf16 %v51, %v51
  %v83 = vld [vmem:[%s1] sm:$0xf]
  %v84 = vld [vmem:[%s1 + $0x4] sm:$0xf]
  %v85 = vld [vmem:[%s1 + $0x8] sm:$0xf]
  %v86 = vld [vmem:[%s1 + $0xc] sm:$0xf]
  %v87 = vld [vmem:[%s1 + $0x10] sm:$0xf]
  %v88 = vld [vmem:[%s1 + $0x14] sm:$0xf]
  %v89 = vld [vmem:[%s1 + $0x18] sm:$0xf]
  %v90 = vld [vmem:[%s1 + $0x1c] sm:$0xf]
  %v91 = vld [vmem:[%s1 + $0x20] sm:$0xf]
  %v92 = vld [vmem:[%s1 + $0x24] sm:$0xf]
  %v93 = vld [vmem:[%s1 + $0x28] sm:$0xf]
  %v94 = vld [vmem:[%s1 + $0x2c] sm:$0xf]
  %v95 = vld [vmem:[%s1 + $0x30] sm:$0xf]
  %v96 = vld [vmem:[%s1 + $0x34] sm:$0xf]
  %v97 = vld [vmem:[%s1 + $0x38] sm:$0xf]
  %v98 = vld [vmem:[%s1 + $0x3c] sm:$0xf]
  %v99 = vld [vmem:[%s1 + $0x40] sm:$0xf]
  %v100 = vld [vmem:[%s1 + $0x44] sm:$0xf]
  %v101 = vld [vmem:[%s1 + $0x48] sm:$0xf]
  %v102 = vld [vmem:[%s1 + $0x4c] sm:$0xf]
  %v103 = vld [vmem:[%s1 + $0x50] sm:$0xf]
  %v104 = vld [vmem:[%s1 + $0x54] sm:$0xf]
  %v105 = vld [vmem:[%s1 + $0x58] sm:$0xf]
  %v106 = vld [vmem:[%s1 + $0x5c] sm:$0xf]
  %v107 = vld [vmem:[%s2] sm:$0x1]
  %v109 = vlaneseq
  %v110 = vshrl.u32 %v109, 7
  %v111 = vsub.s32 0, %v110
  %v112 = vrot.slane %v107, %v111
  %v138 = vunpack.c.l.b16 %v83
  %v139 = vunpack.c.l.b16 %v84
  %v140 = vunpack.c.l.b16 %v85
  %v141 = vunpack.c.l.b16 %v86
  %v142 = vunpack.c.l.b16 %v87
  %v143 = vunpack.c.l.b16 %v88
  %v144 = vunpack.c.l.b16 %v89
  %v145 = vunpack.c.l.b16 %v90
  %v146 = vunpack.c.l.b16 %v91
  %v147 = vunpack.c.l.b16 %v92
  %v148 = vunpack.c.l.b16 %v93
  %v149 = vunpack.c.l.b16 %v94
  %v150 = vunpack.c.l.b16 %v95
  %v151 = vunpack.c.l.b16 %v96
  %v152 = vunpack.c.l.b16 %v97
  %v153 = vunpack.c.l.b16 %v98
  %v154 = vunpack.c.l.b16 %v99
  %v155 = vunpack.c.l.b16 %v100
  %v156 = vunpack.c.l.b16 %v101
  %v157 = vunpack.c.l.b16 %v102
  %v158 = vunpack.c.l.b16 %v103
  %v159 = vunpack.c.l.b16 %v104
  %v160 = vunpack.c.l.b16 %v105
  %v161 = vunpack.c.l.b16 %v106
  %v162 = vpack.c.b16 %v139, %v138
  %v163 = vpack.c.b16 %v141, %v140
  %v164 = vpack.c.b16 %v143, %v142
  %v165 = vpack.c.b16 %v145, %v144
  %v166 = vpack.c.b16 %v147, %v146
  %v167 = vpack.c.b16 %v149, %v148
  %v168 = vpack.c.b16 %v151, %v150
  %v169 = vpack.c.b16 %v153, %v152
  %v170 = vpack.c.b16 %v155, %v154
  %v171 = vpack.c.b16 %v157, %v156
  %v172 = vpack.c.b16 %v159, %v158
  %v173 = vpack.c.b16 %v161, %v160
  %v187 = vsel %vm21, %v78, 0
  %v190 = vsel %vm21, %v80, 0
  %v193 = vsel %vm21, %v82, 0
  %195 = vmatprep.subr.bf16.mxu0 0
  %196 = vmatpush1.bf16.msra.mxu0 %v169
  %197 = vmatprep.subr.bf16.mxu0 0
  %198 = vmatpush1.bf16.msra.mxu0 %v168
  %199 = vmatprep.subr.bf16.mxu0 0
  %200 = vmatpush1.bf16.msra.mxu0 %v167
  %201 = vmatprep.subr.bf16.mxu0 0
  %202 = vmatpush1.bf16.msra.mxu0 %v166
  %203 = vmatprep.subr.bf16.mxu0 0
  %204 = vmatpush1.bf16.msra.mxu0 %v165
  %205 = vmatprep.subr.bf16.mxu0 0
  %206 = vmatpush1.bf16.msra.mxu0 %v164
  %207 = vmatprep.subr.bf16.mxu0 0
  %208 = vmatpush1.bf16.msra.mxu0 %v163
  %209 = vmatprep.subr.bf16.mxu0 0
  %210 = vmatpush1.bf16.msra.mxu0 %v162
  %211 = vmatprep.subr.bf16.mxu0 0
  %212 = vmatpush2.bf16.msra.mxu0 0
  %213 = vmatprep.subr.bf16.mxu0 0
  %214 = vmatpush2.bf16.msra.mxu0 0
  %215 = vmatprep.subr.bf16.mxu0 0
  %216 = vmatpush2.bf16.msra.mxu0 0
  %217 = vmatprep.subr.bf16.mxu0 0
  %218 = vmatpush2.bf16.msra.mxu0 0
  %219 = vmatprep.subr.bf16.mxu0 0
  %220 = vmatpush2.bf16.msra.mxu0 %v173
  %221 = vmatprep.subr.bf16.mxu0 0
  %222 = vmatpush2.bf16.msra.mxu0 %v172
  %223 = vmatprep.subr.bf16.mxu0 0
  %224 = vmatpush2.bf16.msra.mxu0 %v171
  %225 = vmatprep.subr.bf16.mxu0 0
  %226 = vmatpush2.bf16.msra.mxu0 %v170
  %227 = vmatprep.mubr.bf16.mxu0 %v187
  %228 = vmatmul.mubr.bf16.gmra.mxu0 %v77
  %v229 = vpop.f32.mrf.mxu0
  %v230 = vadd.f32 %v112, %v229
  %v231 = vpop.f32.mrf.mxu0
  %v232 = vpop.f32.mrf.mxu0
  %v233 = vadd.f32 %v112, %v232
  %v234 = vpop.f32.mrf.mxu0
  %235 = vmatprep.mubr.bf16.mxu0 %v190
  %236 = vmatmul.mubr.bf16.gmra.mxu0 %v79
  %v237 = vpop.f32.mrf.mxu0
  %v238 = vadd.f32 %v112, %v237
  %v239 = vpop.f32.mrf.mxu0
  %v240 = vpop.f32.mrf.mxu0
  %v241 = vadd.f32 %v112, %v240
  %v242 = vpop.f32.mrf.mxu0
  %243 = vmatprep.mubr.bf16.mxu0 %v193
  %244 = vmatmul.mubr.bf16.gmra.mxu0 %v81
  %v245 = vpop.f32.mrf.mxu0
  %v246 = vadd.f32 %v112, %v245
  %v247 = vpop.f32.mrf.mxu0
  %v248 = vpop.f32.mrf.mxu0
  %v249 = vpop.f32.mrf.mxu0
  %250 = vdwg.mxu0
  %vm251 = vcmp.gt.f32.partialorder %v230, 0.0
  %vm252 = vcmp.gt.f32.partialorder %v233, 0.0
  %vm253 = vcmp.gt.f32.partialorder %v238, 0.0
  %vm254 = vcmp.gt.f32.partialorder %v241, 0.0
  %vm255 = vcmp.gt.f32.partialorder %v246, 0.0
  %v256 = vmul.f32 %v230, 0.01
  %v257 = vmul.f32 %v233, 0.01
  %v258 = vmul.f32 %v238, 0.01
  %v259 = vmul.f32 %v241, 0.01
  %v260 = vmul.f32 %v246, 0.01
  %v261 = vsel %vm251, %v230, %v256
  %v262 = vsel %vm252, %v233, %v257
  %v263 = vsel %vm253, %v238, %v258
  %v264 = vsel %vm254, %v241, %v259
  %v265 = vsel %vm255, %v246, %v260
  %266 = vst [vmem:[#allocation3] sm:$0xff] 0.0
  %267 = vst [vmem:[#allocation3 + $0x8] sm:$0xff] 0.0
  %268 = vst [vmem:[#allocation3 + $0x10] sm:$0xff] 0.0
  %269 = vst [vmem:[#allocation3 + $0x18] sm:$0xff] 0.0
  %270 = vst [vmem:[#allocation3 + $0x20] sm:$0xf] 0.0
  %271 = vst [vmem:[#allocation3 + $0x1] sm:$0xff] %v261
  %272 = vst [vmem:[#allocation3 + $0x9] sm:$0xff] %v262
  %273 = vst [vmem:[#allocation3 + $0x11] sm:$0xff] %v263
  %274 = vst [vmem:[#allocation3 + $0x19] sm:$0xff] %v264
  %275 = vst [vmem:[#allocation3 + $0x21] sm:$0x3] %v265
  %276 = vst [vmem:[#allocation3 + $0x11] sm:$0x3] 0.0
  %v277 = vld [vmem:[#allocation3] sm:$0xff]
  %v278 = vld [vmem:[#allocation3 + $0x8] sm:$0xff]
  %v279 = vld [vmem:[#allocation3 + $0x10] sm:$0xff]
  %v280 = vld [vmem:[#allocation3 + $0x18] sm:$0xff]
  %v281 = vld [vmem:[#allocation3 + $0x20] sm:$0x3]
  %v282 = vld [vmem:[#allocation3 + $0x1] sm:$0xff]
  %v283 = vld [vmem:[#allocation3 + $0x9] sm:$0xff]
  %v284 = vld [vmem:[#allocation3 + $0x11] sm:$0xff]
  %v285 = vld [vmem:[#allocation3 + $0x19] sm:$0xff]
  %v286 = vld [vmem:[#allocation3 + $0x21] sm:$0x3]
  %v287 = vld [vmem:[#allocation3 + $0x2] sm:$0xff]
  %v288 = vld [vmem:[#allocation3 + $0xa] sm:$0xff]
  %v289 = vld [vmem:[#allocation3 + $0x12] sm:$0xff]
  %v290 = vld [vmem:[#allocation3 + $0x1a] sm:$0xff]
  %v291 = vld [vmem:[#allocation3 + $0x22] sm:$0x3]
  %v292 = vpack.c.bf16 %v278, %v277
  %v293 = vpack.c.bf16 %v283, %v282
  %v294 = vpack.c.bf16 %v288, %v287
  %v295 = vpack.c.bf16 %v280, %v279
  %v296 = vpack.c.bf16 %v285, %v284
  %v297 = vpack.c.bf16 %v290, %v289
  %v298 = vpack.c.bf16 %v281, %v281
  %v299 = vpack.c.bf16 %v286, %v286
  %v300 = vpack.c.bf16 %v291, %v291
  %v301 = vld [vmem:[%s3] sm:$0xf]
  %v302 = vld [vmem:[%s3 + $0x4] sm:$0xf]
  %v303 = vld [vmem:[%s3 + $0x8] sm:$0xf]
  %v304 = vld [vmem:[%s3 + $0xc] sm:$0xf]
  %v305 = vld [vmem:[%s3 + $0x10] sm:$0xf]
  %v306 = vld [vmem:[%s3 + $0x14] sm:$0xf]
  %v307 = vld [vmem:[%s3 + $0x18] sm:$0xf]
  %v308 = vld [vmem:[%s3 + $0x1c] sm:$0xf]
  %v309 = vld [vmem:[%s3 + $0x20] sm:$0xf]
  %v310 = vld [vmem:[%s3 + $0x24] sm:$0xf]
  %v311 = vld [vmem:[%s3 + $0x28] sm:$0xf]
  %v312 = vld [vmem:[%s3 + $0x2c] sm:$0xf]
  %v313 = vld [vmem:[%s3 + $0x30] sm:$0xf]
  %v314 = vld [vmem:[%s3 + $0x34] sm:$0xf]
  %v315 = vld [vmem:[%s3 + $0x38] sm:$0xf]
  %v316 = vld [vmem:[%s3 + $0x3c] sm:$0xf]
  %v317 = vld [vmem:[%s3 + $0x40] sm:$0xf]
  %v318 = vld [vmem:[%s3 + $0x44] sm:$0xf]
  %v319 = vld [vmem:[%s3 + $0x48] sm:$0xf]
  %v320 = vld [vmem:[%s3 + $0x4c] sm:$0xf]
  %v321 = vld [vmem:[%s3 + $0x50] sm:$0xf]
  %v322 = vld [vmem:[%s3 + $0x54] sm:$0xf]
  %v323 = vld [vmem:[%s3 + $0x58] sm:$0xf]
  %v324 = vld [vmem:[%s3 + $0x5c] sm:$0xf]
  %v325 = vld [vmem:[%s3 + $0x60] sm:$0xf]
  %v326 = vld [vmem:[%s3 + $0x64] sm:$0xf]
  %v327 = vld [vmem:[%s3 + $0x68] sm:$0xf]
  %v328 = vld [vmem:[%s3 + $0x6c] sm:$0xf]
  %v329 = vld [vmem:[%s3 + $0x70] sm:$0xf]
  %v330 = vld [vmem:[%s3 + $0x74] sm:$0xf]
  %v331 = vld [vmem:[%s3 + $0x78] sm:$0xf]
  %v332 = vld [vmem:[%s3 + $0x7c] sm:$0xf]
  %v333 = vld [vmem:[%s3 + $0x80] sm:$0xf]
  %v334 = vld [vmem:[%s3 + $0x84] sm:$0xf]
  %v335 = vld [vmem:[%s3 + $0x88] sm:$0xf]
  %v336 = vld [vmem:[%s3 + $0x8c] sm:$0xf]
  %v337 = vld [vmem:[%s3 + $0x90] sm:$0xf]
  %v338 = vld [vmem:[%s3 + $0x94] sm:$0xf]
  %v339 = vld [vmem:[%s3 + $0x98] sm:$0xf]
  %v340 = vld [vmem:[%s3 + $0x9c] sm:$0xf]
  %v341 = vld [vmem:[%s3 + $0xa0] sm:$0xf]
  %v342 = vld [vmem:[%s3 + $0xa4] sm:$0xf]
  %v343 = vld [vmem:[%s3 + $0xa8] sm:$0xf]
  %v344 = vld [vmem:[%s3 + $0xac] sm:$0xf]
  %v345 = vld [vmem:[%s3 + $0xb0] sm:$0xf]
  %v346 = vld [vmem:[%s3 + $0xb4] sm:$0xf]
  %v347 = vld [vmem:[%s3 + $0xb8] sm:$0xf]
  %v348 = vld [vmem:[%s3 + $0xbc] sm:$0xf]
  %v349 = vld [vmem:[%s4] sm:$0x1]
  %v351 = vlaneseq
  %v352 = vshrl.u32 %v351, 7
  %v353 = vsub.s32 0, %v352
  %v354 = vrot.slane %v349, %v353
  %v404 = vunpack.c.l.b16 %v301
  %v405 = vunpack.c.l.b16 %v302
  %v406 = vunpack.c.l.b16 %v303
  %v407 = vunpack.c.l.b16 %v304
  %v408 = vunpack.c.l.b16 %v305
  %v409 = vunpack.c.l.b16 %v306
  %v410 = vunpack.c.l.b16 %v307
  %v411 = vunpack.c.l.b16 %v308
  %v412 = vunpack.c.l.b16 %v309
  %v413 = vunpack.c.l.b16 %v310
  %v414 = vunpack.c.l.b16 %v311
  %v415 = vunpack.c.l.b16 %v312
  %v416 = vunpack.c.l.b16 %v313
  %v417 = vunpack.c.l.b16 %v314
  %v418 = vunpack.c.l.b16 %v315
  %v419 = vunpack.c.l.b16 %v316
  %v420 = vunpack.c.l.b16 %v317
  %v421 = vunpack.c.l.b16 %v318
  %v422 = vunpack.c.l.b16 %v319
  %v423 = vunpack.c.l.b16 %v320
  %v424 = vunpack.c.l.b16 %v321
  %v425 = vunpack.c.l.b16 %v322
  %v426 = vunpack.c.l.b16 %v323
  %v427 = vunpack.c.l.b16 %v324
  %v428 = vunpack.c.l.b16 %v325
  %v429 = vunpack.c.l.b16 %v326
  %v430 = vunpack.c.l.b16 %v327
  %v431 = vunpack.c.l.b16 %v328
  %v432 = vunpack.c.l.b16 %v329
  %v433 = vunpack.c.l.b16 %v330
  %v434 = vunpack.c.l.b16 %v331
  %v435 = vunpack.c.l.b16 %v332
  %v436 = vunpack.c.l.b16 %v333
  %v437 = vunpack.c.l.b16 %v334
  %v438 = vunpack.c.l.b16 %v335
  %v439 = vunpack.c.l.b16 %v336
  %v440 = vunpack.c.l.b16 %v337
  %v441 = vunpack.c.l.b16 %v338
  %v442 = vunpack.c.l.b16 %v339
  %v443 = vunpack.c.l.b16 %v340
  %v444 = vunpack.c.l.b16 %v341
  %v445 = vunpack.c.l.b16 %v342
  %v446 = vunpack.c.l.b16 %v343
  %v447 = vunpack.c.l.b16 %v344
  %v448 = vunpack.c.l.b16 %v345
  %v449 = vunpack.c.l.b16 %v346
  %v450 = vunpack.c.l.b16 %v347
  %v451 = vunpack.c.l.b16 %v348
  %v452 = vpack.c.b16 %v405, %v404
  %v453 = vpack.c.b16 %v407, %v406
  %v454 = vpack.c.b16 %v409, %v408
  %v455 = vpack.c.b16 %v411, %v410
  %v456 = vpack.c.b16 %v413, %v412
  %v457 = vpack.c.b16 %v415, %v414
  %v458 = vpack.c.b16 %v417, %v416
  %v459 = vpack.c.b16 %v419, %v418
  %v460 = vpack.c.b16 %v421, %v420
  %v461 = vpack.c.b16 %v423, %v422
  %v462 = vpack.c.b16 %v425, %v424
  %v463 = vpack.c.b16 %v427, %v426
  %v464 = vpack.c.b16 %v429, %v428
  %v465 = vpack.c.b16 %v431, %v430
  %v466 = vpack.c.b16 %v433, %v432
  %v467 = vpack.c.b16 %v435, %v434
  %v468 = vpack.c.b16 %v437, %v436
  %v469 = vpack.c.b16 %v439, %v438
  %v470 = vpack.c.b16 %v441, %v440
  %v471 = vpack.c.b16 %v443, %v442
  %v472 = vpack.c.b16 %v445, %v444
  %v473 = vpack.c.b16 %v447, %v446
  %v474 = vpack.c.b16 %v449, %v448
  %v475 = vpack.c.b16 %v451, %v450
  %500 = vmatprep.subr.bf16.mxu0 0
  %501 = vmatpush1.bf16.msra.mxu0 %v459
  %502 = vmatprep.subr.bf16.mxu0 0
  %503 = vmatpush1.bf16.msra.mxu0 %v458
  %504 = vmatprep.subr.bf16.mxu0 0
  %505 = vmatpush1.bf16.msra.mxu0 %v457
  %506 = vmatprep.subr.bf16.mxu0 0
  %507 = vmatpush1.bf16.msra.mxu0 %v456
  %508 = vmatprep.subr.bf16.mxu0 0
  %509 = vmatpush1.bf16.msra.mxu0 %v455
  %510 = vmatprep.subr.bf16.mxu0 0
  %511 = vmatpush1.bf16.msra.mxu0 %v454
  %512 = vmatprep.subr.bf16.mxu0 0
  %513 = vmatpush1.bf16.msra.mxu0 %v453
  %514 = vmatprep.subr.bf16.mxu0 0
  %515 = vmatpush1.bf16.msra.mxu0 %v452
  %516 = vmatprep.subr.bf16.mxu0 0
  %517 = vmatpush2.bf16.msra.mxu0 %v467
  %518 = vmatprep.subr.bf16.mxu0 0
  %519 = vmatpush2.bf16.msra.mxu0 %v466
  %520 = vmatprep.subr.bf16.mxu0 0
  %521 = vmatpush2.bf16.msra.mxu0 %v465
  %522 = vmatprep.subr.bf16.mxu0 0
  %523 = vmatpush2.bf16.msra.mxu0 %v464
  %524 = vmatprep.subr.bf16.mxu0 0
  %525 = vmatpush2.bf16.msra.mxu0 %v463
  %526 = vmatprep.subr.bf16.mxu0 0
  %527 = vmatpush2.bf16.msra.mxu0 %v462
  %528 = vmatprep.subr.bf16.mxu0 0
  %529 = vmatpush2.bf16.msra.mxu0 %v461
  %530 = vmatprep.subr.bf16.mxu0 0
  %531 = vmatpush2.bf16.msra.mxu0 %v460
  %532 = vmatprep.mubr.bf16.mxu0 %v293
  %533 = vmatmul.mubr.bf16.gmra.mxu0 %v292
  %v534 = vpop.f32.mrf.mxu0
  %v535 = vadd.f32 %v354, %v534
  %v536 = vpop.f32.mrf.mxu0
  %v537 = vpop.f32.mrf.mxu0
  %v538 = vadd.f32 %v354, %v537
  %v539 = vpop.f32.mrf.mxu0
  %540 = vmatprep.mubr.bf16.mxu0 %v296
  %541 = vmatmul.mubr.bf16.gmra.mxu0 %v295
  %v542 = vpop.f32.mrf.mxu0
  %v543 = vadd.f32 %v354, %v542
  %v544 = vpop.f32.mrf.mxu0
  %v545 = vpop.f32.mrf.mxu0
  %v546 = vadd.f32 %v354, %v545
  %v547 = vpop.f32.mrf.mxu0
  %548 = vmatprep.mubr.bf16.mxu0 %v299
  %549 = vmatmul.mubr.bf16.gmra.mxu0 %v298
  %v550 = vpop.f32.mrf.mxu0
  %v551 = vadd.f32 %v354, %v550
  %v552 = vpop.f32.mrf.mxu0
  %v553 = vpop.f32.mrf.mxu0
  %v554 = vpop.f32.mrf.mxu0
  %555 = vdwg.mxu0
  %556 = vmatprep.subr.bf16.mxu0 0
  %557 = vmatpush1.bf16.msra.mxu0 %v475
  %558 = vmatprep.subr.bf16.mxu0 0
  %559 = vmatpush1.bf16.msra.mxu0 %v474
  %560 = vmatprep.subr.bf16.mxu0 0
  %561 = vmatpush1.bf16.msra.mxu0 %v473
  %562 = vmatprep.subr.bf16.mxu0 0
  %563 = vmatpush1.bf16.msra.mxu0 %v472
  %564 = vmatprep.subr.bf16.mxu0 0
  %565 = vmatpush1.bf16.msra.mxu0 %v471
  %566 = vmatprep.subr.bf16.mxu0 0
  %567 = vmatpush1.bf16.msra.mxu0 %v470
  %568 = vmatprep.subr.bf16.mxu0 0
  %569 = vmatpush1.bf16.msra.mxu0 %v469
  %570 = vmatprep.subr.bf16.mxu0 0
  %571 = vmatpush1.bf16.msra.mxu0 %v468
  %572 = vmatprep.subr.bf16.mxu0 0
  %573 = vmatpush2.bf16.msra.mxu0 0
  %574 = vmatprep.subr.bf16.mxu0 0
  %575 = vmatpush2.bf16.msra.mxu0 0
  %576 = vmatprep.subr.bf16.mxu0 0
  %577 = vmatpush2.bf16.msra.mxu0 0
  %578 = vmatprep.subr.bf16.mxu0 0
  %579 = vmatpush2.bf16.msra.mxu0 0
  %580 = vmatprep.subr.bf16.mxu0 0
  %581 = vmatpush2.bf16.msra.mxu0 0
  %582 = vmatprep.subr.bf16.mxu0 0
  %583 = vmatpush2.bf16.msra.mxu0 0
  %584 = vmatprep.subr.bf16.mxu0 0
  %585 = vmatpush2.bf16.msra.mxu0 0
  %586 = vmatprep.subr.bf16.mxu0 0
  %587 = vmatpush2.bf16.msra.mxu0 0
  %588 = vmatprep.mubr.bf16.mxu0 0
  %589 = vmatmul.mubr.bf16.gmra.mxu0 %v294
  %v590 = vpop.f32.mrf.mxu0
  %v591 = vadd.f32 %v535, %v590
  %v592 = vpop.f32.mrf.mxu0
  %v593 = vpop.f32.mrf.mxu0
  %v594 = vadd.f32 %v538, %v593
  %v595 = vpop.f32.mrf.mxu0
  %596 = vmatprep.mubr.bf16.mxu0 0
  %597 = vmatmul.mubr.bf16.gmra.mxu0 %v297
  %v598 = vpop.f32.mrf.mxu0
  %v599 = vadd.f32 %v543, %v598
  %v600 = vpop.f32.mrf.mxu0
  %v601 = vpop.f32.mrf.mxu0
  %v602 = vadd.f32 %v546, %v601
  %v603 = vpop.f32.mrf.mxu0
  %604 = vmatprep.mubr.bf16.mxu0 0
  %605 = vmatmul.mubr.bf16.gmra.mxu0 %v300
  %v606 = vpop.f32.mrf.mxu0
  %v607 = vadd.f32 %v551, %v606
  %v608 = vpop.f32.mrf.mxu0
  %v609 = vpop.f32.mrf.mxu0
  %v610 = vpop.f32.mrf.mxu0
  %611 = vdwg.mxu0
  %vm612 = vcmp.gt.f32.partialorder %v591, 0.0
  %vm613 = vcmp.gt.f32.partialorder %v594, 0.0
  %vm614 = vcmp.gt.f32.partialorder %v599, 0.0
  %vm615 = vcmp.gt.f32.partialorder %v602, 0.0
  %vm616 = vcmp.gt.f32.partialorder %v607, 0.0
  %v617 = vmul.f32 %v591, 0.01
  %v618 = vmul.f32 %v594, 0.01
  %v619 = vmul.f32 %v599, 0.01
  %v620 = vmul.f32 %v602, 0.01
  %v621 = vmul.f32 %v607, 0.01
  %v622 = vsel %vm612, %v591, %v617
  %v623 = vsel %vm613, %v594, %v618
  %v624 = vsel %vm614, %v599, %v619
  %v625 = vsel %vm615, %v602, %v620
  %v626 = vsel %vm616, %v607, %v621
  %627 = vst [vmem:[%s5] sm:$0xff] %v622
  %628 = vst [vmem:[%s5 + $0x8] sm:$0xff] %v623
  %s629 = scalar_lea.vmem %s5, 16
  %630 = vst [vmem:[%s629 - $0x2] sm:$0xfc] %v624
  %631 = vst [vmem:[%s629 + $0x6] sm:$0xff] %v625
  %632 = vst [vmem:[%s629 + $0xe] sm:$0x3] %v626
  // Predicated region
  $region22: #{double_conv_strided.1} parent=0 // pred_check
    _
  $region23: #{double_conv_strided.1} parent=0 // pred_check_branch
    %634 = sbr.rel (0) target = $region25
  $region24: #{double_conv_strided.1} parent=0 // pred_region
    _
  $region25: #{double_conv_strided.1} parent=0 // pred_fallthru
    _
  // Predicated region
  $region26: #{double_conv_strided.1} parent=0 // pred_check
    _
  $region27: #{double_conv_strided.1} parent=0 // pred_check_branch
    %636 = sbr.rel (0) target = $region29
  $region28: #{double_conv_strided.1} parent=0 // pred_region
    _
  $region29: #{double_conv_strided.1} parent=0 // pred_fallthru
    _

</llo_original>
